<compile_context>
chip_gen: v6e
topology: v6e:2x2x1
jax: 0.10.0
libtpu: 0.0.40
codegen_flags: <defaults>
</compile_context>

<pallas_src>
import numpy as np
import jax
import jax.numpy as jnp
from jax.experimental import pallas as pl
from jax.experimental.pallas import tpu as pltpu


# ----------------------------------------------------------------------------
# Deterministic parameter construction (mirrors InvConv2dLU.__init__)
# ----------------------------------------------------------------------------
def _lu_with_pivoting(a):
    """Plain-numpy LU with partial pivoting, matching scipy.linalg.lu:
    returns (p, l, u) with a = p @ l @ u."""
    a = a.astype(np.float64).copy()
    n = a.shape[0]
    perm = np.eye(n)
    L = np.eye(n)
    U = a.copy()
    for k in range(n - 1):
        piv = int(np.argmax(np.abs(U[k:, k]))) + k
        if piv != k:
            U[[k, piv], k:] = U[[piv, k], k:]
            L[[k, piv], :k] = L[[piv, k], :k]
            perm[[k, piv], :] = perm[[piv, k], :]
        for i in range(k + 1, n):
            L[i, k] = U[i, k] / U[k, k]
            U[i, k:] -= L[i, k] * U[k, k:]
    # perm @ a = L @ U  ->  a = perm.T @ L @ U
    return perm.T, L, U


def make_invconv_params(in_channel, seed=0):
    rng = np.random.RandomState(seed)
    weight = rng.randn(in_channel, in_channel)
    q, _ = np.linalg.qr(weight)
    w_p, w_l, w_u = _lu_with_pivoting(q.astype(np.float32))
    w_s = np.diag(w_u).copy()
    w_u = np.triu(w_u, 1)
    u_mask = np.triu(np.ones_like(w_u), 1)
    l_mask = u_mask.T
    params = dict(
        w_p=w_p.astype(np.float32),
        w_l=w_l.astype(np.float32),
        w_u=w_u.astype(np.float32),
        log_w_s=np.log(np.abs(w_s)).astype(np.float32),   # the nn.Parameter "w_s"
        s_sign=np.sign(w_s).astype(np.float32),
        u_mask=u_mask.astype(np.float32),
        l_mask=l_mask.astype(np.float32),
        l_eye=np.eye(in_channel, dtype=np.float32),
    )
    return {k: jnp.asarray(v) for k, v in params.items()}


# ----------------------------------------------------------------------------
# LU -> conv weight (tiny; done once in XLA so the kernel grid is stateless)
# ----------------------------------------------------------------------------
def calc_weight(params):
    s = params["s_sign"] * jnp.exp(params["log_w_s"])
    return (params["w_p"]
            @ (params["w_l"] * params["l_mask"] + params["l_eye"])
            @ (params["w_u"] * params["u_mask"] + jnp.diag(s)))


# ----------------------------------------------------------------------------
# Pallas kernel: the 1x1-conv hot path, lane-dense
#   w_ref:   (C, C)            resident across the grid (constant index_map)
#   x_ref:   (1, C, tile_hw)   pixels on lanes
#   out_ref: (1, C, tile_hw)
# ----------------------------------------------------------------------------
def _invconv_kernel(w_ref, x_ref, out_ref):
    out_ref[0] = jnp.dot(
        w_ref[...], x_ref[0], preferred_element_type=jnp.float32
    ).astype(out_ref.dtype)


# ----------------------------------------------------------------------------
# Generation-aware VMEM budgets & lane-tile selection
# ----------------------------------------------------------------------------
def _vmem_generation_config():
    """Return (per_buffer_budget_bytes, vmem_limit_bytes) for this chip."""
    try:
        vmem_cap = pltpu.get_tpu_info().vmem_capacity_bytes
    except Exception:
        vmem_cap = 64 << 20          # conservative fallback (v7x per-TC VMEM)
    if vmem_cap >= (100 << 20):      # v5e / v6e: 128 MiB physical VMEM
        return 16 << 20, 96 << 20
    else:                            # v7x: 64 MiB physical VMEM per TC
        return 10 << 20, 48 << 20


def _pick_tile_hw(hw_padded, c, n, budget_bytes, min_total_steps=4):
    """Pick the lane-tile width (multiple of 128 that divides the padded H*W):
      * one f32 (C, tile) buffer stays under `budget_bytes`, accounting for
        sublane padding (C < 8 still occupies 8 sublanes);
      * total grid steps n * (hw_padded // tile) >= min_total_steps whenever
        possible, so the double-buffer pipeline and megacore both engage."""
    assert hw_padded % 128 == 0
    itemsize = 4
    c_sub = max(8, ((c + 7) // 8) * 8)                      # sublane-padded rows
    max_cols = max(128, (budget_bytes // (c_sub * itemsize)) // 128 * 128)

    want_tiles = max(1, -(-min_total_steps // max(n, 1)))   # tiles per batch item
    split_cols = max(128, (hw_padded // want_tiles) // 128 * 128)

    target = min(max_cols, split_cols, hw_padded)
    t = (target // 128) * 128
    while hw_padded % t != 0:                               # t=128 always divides
        t -= 128
    return t


# ----------------------------------------------------------------------------
# Forward wrapper
# ----------------------------------------------------------------------------
def invconv2d_lu_forward(x_nchw, params, *, tile_hw=None):
    """Forward of InvConv2dLU. x_nchw: (N, C, H, W) float32. Returns (out_nchw, logdet)."""
    n, c, h, w = x_nchw.shape
    hw = h * w

    weight = calc_weight(params)                      # (C, C), built once by XLA
    logdet = (h * w) * jnp.sum(params["log_w_s"])     # scalar, trivial in XLA

    # NCHW -> (N, C, H*W): contiguous reshape (free); pixels land on the lane axis.
    x3d = x_nchw.reshape(n, c, hw)

    # Pad the lane axis to a multiple of 128 so every tile is lane-dense and the
    # VMEM budget is always honoured (padded columns are discarded afterwards).
    hw_padded = ((hw + 127) // 128) * 128
    if hw_padded != hw:
        x3d = jnp.pad(x3d, ((0, 0), (0, 0), (0, hw_padded - hw)))

    budget_bytes, vmem_limit = _vmem_generation_config()
    if tile_hw is None:
        tile_hw = _pick_tile_hw(hw_padded, c, n, budget_bytes)
    assert hw_padded % tile_hw == 0 and tile_hw % 128 == 0, "tile_hw must be a multiple of 128 dividing padded H*W"

    grid = (n, hw_padded // tile_hw)

    # Memory-bound cost hint for XLA's scheduler (flops << bytes here).
    cost = pl.CostEstimate(
        flops=2 * n * c * c * hw_padded,
        transcendentals=0,
        bytes_accessed=4 * (2 * n * c * hw_padded + c * c),
    )

    out3d = pl.pallas_call(
        _invconv_kernel,
        out_shape=jax.ShapeDtypeStruct((n, c, hw_padded), jnp.float32),
        grid_spec=pltpu.PrefetchScalarGridSpec(
            num_scalar_prefetch=0,
            grid=grid,
            in_specs=[
                pl.BlockSpec((c, c), lambda b, t: (0, 0)),              # weight (constant)
                pl.BlockSpec((1, c, tile_hw), lambda b, t: (b, 0, t)),  # x tile
            ],
            out_specs=pl.BlockSpec((1, c, tile_hw), lambda b, t: (b, 0, t)),
        ),
        compiler_params=pltpu.CompilerParams(
            # Stateless grid (weight is a plain input): both axes fully parallel
            # -> megacore sharding on v7x, harmless on v5e/v6e.
            dimension_semantics=("parallel", "parallel"),
            # Generation-aware scoped-VMEM limit; tiles are sized to fit well
            # under it (4 live streaming buffers + tiny weight).
            vmem_limit_bytes=vmem_limit,
        ),
        cost_estimate=cost,
    )(weight, x3d)

    if hw_padded != hw:
        out3d = out3d[:, :, :hw]
    out_nchw = out3d.reshape(n, c, h, w)              # free reshape back to NCHW
    return out_nchw, logdet


# ----------------------------------------------------------------------------
# Pure-JAX reference (for correctness check)
# ----------------------------------------------------------------------------
def invconv2d_lu_reference(x_nchw, params):
    h, w = x_nchw.shape[2], x_nchw.shape[3]
    weight = calc_weight(params)
    out = jnp.einsum("oi,nihw->nohw", weight, x_nchw)
    logdet = h * w * jnp.sum(params["log_w_s"])
    return out, logdet


if __name__ == "__main__":
    N, C, H, W = 2, 4, 16, 16
    params = make_invconv_params(C, seed=0)

    key = jax.random.PRNGKey(0)
    x = jax.random.normal(key, (N, C, H, W), dtype=jnp.float32)

    out, logdet = invconv2d_lu_forward(x, params)
    out = jax.block_until_ready(out)
    logdet = jax.block_until_ready(logdet)

    ref_out, ref_logdet = invconv2d_lu_reference(x, params)
    assert out.shape == (N, C, H, W)
    np.testing.assert_allclose(np.asarray(out), np.asarray(ref_out), rtol=1e-5, atol=1e-5)
    np.testing.assert_allclose(np.asarray(logdet), np.asarray(ref_logdet), rtol=1e-5, atol=1e-5)

    print("KERNEL_OK")
</pallas_src>

<mosaic_0001>
module attributes {stable_mosaic.version = 11 : i64} {
  func.func @_invconv_kernel(%arg0: i32, %arg1: i32, %arg2: memref<4x4xf32, #tpu.memory_space<vmem>>, %arg3: memref<1x4x128xf32, #tpu.memory_space<vmem>>, %arg4: memref<1x4x128xf32, #tpu.memory_space<vmem>>) attributes {dimension_semantics = [#tpu.dimension_semantics<parallel>, #tpu.dimension_semantics<parallel>], iteration_bounds = array<i64: 2, 2>, scalar_prefetch = 0 : i64, scratch_operands = 0 : i64, tpu.core_type = #tpu.core_type<tc>, window_params = [{pipeline_mode = #tpu.pipeline_mode<synchronous>, transform_indices = @transform_0, window_bounds = array<i64: 4, 4>}, {transform_indices = @transform_1, window_bounds = array<i64: 1, 4, 128>}, {transform_indices = @transform_2, window_bounds = array<i64: 1, 4, 128>}]} {
    %c0 = arith.constant 0 : index
    %c0_0 = arith.constant 0 : index
    %0 = vector.load %arg2[%c0, %c0_0] : memref<4x4xf32, #tpu.memory_space<vmem>>, vector<4x4xf32>
    %c0_1 = arith.constant 0 : index
    %c0_2 = arith.constant 0 : index
    %c0_3 = arith.constant 0 : index
    %1 = vector.load %arg3[%c0_1, %c0_2, %c0_3] : memref<1x4x128xf32, #tpu.memory_space<vmem>>, vector<1x4x128xf32>
    %2 = vector.shape_cast %1 : vector<1x4x128xf32> to vector<4x128xf32>
    %cst = arith.constant dense<0.000000e+00> : vector<4x128xf32>
    %3 = tpu.matmul %0, %2, %cst {dimension_numbers = #tpu.dot_dimension_numbers<[1], [0], [0], [1], [0, 0, 1, 1], [], []>} : vector<4x4xf32>, vector<4x128xf32>, vector<4x128xf32> -> vector<4x128xf32>
    %c0_4 = arith.constant 0 : index
    %c0_5 = arith.constant 0 : index
    %c0_6 = arith.constant 0 : index
    %4 = vector.load %arg4[%c0_4, %c0_5, %c0_6] : memref<1x4x128xf32, #tpu.memory_space<vmem>>, vector<1x4x128xf32>
    %5 = vector.shape_cast %4 : vector<1x4x128xf32> to vector<4x128xf32>
    %6 = vector.shape_cast %3 : vector<4x128xf32> to vector<1x4x128xf32>
    tpu.vector_store %arg4[%c0_4, %c0_5, %c0_6], %6 {strides = array<i32>} : memref<1x4x128xf32, #tpu.memory_space<vmem>>, vector<1x4x128xf32>,
    return
  }
  func.func @transform_0(%arg0: i32, %arg1: i32) -> (i32, i32) {
    %c0_i32 = arith.constant 0 : i32
    %c0_i32_0 = arith.constant 0 : i32
    %c0_i32_1 = arith.constant 0 : i32
    return %c0_i32, %c0_i32_0 : i32, i32
  }
  func.func @transform_1(%arg0: i32, %arg1: i32) -> (i32, i32, i32) {
    %c0_i32 = arith.constant 0 : i32
    %c0_i32_0 = arith.constant 0 : i32
    return %arg0, %c0_i32, %arg1 : i32, i32, i32
  }
  func.func @transform_2(%arg0: i32, %arg1: i32) -> (i32, i32, i32) {
    %c0_i32 = arith.constant 0 : i32
    %c0_i32_0 = arith.constant 0 : i32
    return %arg0, %c0_i32, %arg1 : i32, i32, i32
  }
}

</mosaic_0001>

<llo_original>
// kernel: tpu_custom_call.1
$region0: #{tpu_custom_call.1}
  #allocation0 [shape = 'u32[]', space=smem, size = 0x4, offset = 0x4, fixed_abs, tag = 'smem constant byte address 0x4 - core index']
  #allocation1 [shape = 'u32[144,128]{1,0:T(1,128)}', space=vmem, size = 0x12000, scoped, tag = 'internal scratch']
  %s0 = inlined_call_operand.hbm [shape: f32[4,4], index: 0, kind: input, shape index: {}]
  %s1 = inlined_call_operand.hbm [shape: f32[2,4,256], index: 1, kind: input, shape index: {}]
  %s2 = inlined_call_operand.hbm [shape: f32[2,4,256], index: 2, kind: output, shape index: {}]
  %s3 = sld [smem:[#allocation0]]
  $region49: #{tpu_custom_call.1} parent=0
    _
  %s5 = ssub.s32 1, %s3
  %s6 = scalar_select 0, %s5, %s3
  $region1: #{tpu_custom_call.1} parent=0
    #allocation2 [shape = 'u8[2048]{0}', space=vmem, size = 0x800, scoped, tag = 'input window, operand 0, single buffered']
    #allocation3 [shape = 's32[2]{0}', space=sflag, size = 0x8, scoped, tag = 'scoped memory for tpu_custom_call.1']
    #allocation4 [shape = 's32[2]{0}', space=sflag, size = 0x8, scoped, tag = 'scoped memory for tpu_custom_call.1']
    #allocation5 [shape = 'u8[4096]{0}', space=vmem, size = 0x1000, scoped, tag = 'input window, operand 1']
    #allocation6 [shape = 's32[2]{0}', space=sflag, size = 0x8, scoped, tag = 'scoped memory for tpu_custom_call.1']
    #allocation7 [shape = 'u8[4096]{0}', space=vmem, size = 0x1000, scoped, tag = 'output window, operand 0']
    %7 = vsyncpa [#allocation3], 0
    %8 = vsyncpa [#allocation6], 0
    %s9 = scalar_lea.sflag [#allocation6], 1
    %10 = vsyncpa %s9, 0
    %11 = vsyncpa [#allocation4], 0
    %s12 = scalar_lea.sflag [#allocation4], 1
    %13 = vsyncpa %s12, 0
    loop: start=0, step=1, limit=6
    $region2: #{tpu_custom_call.1} parent=1 // loop_pre_header
      _
    $region3: #{tpu_custom_call.1} parent=1 // loop_header
      %s15 = sphi 0, %s19
      %p16 = scmp.ge.s32.totalorder %s15, 6
      %s22 = sphi 0, %s34
      %s23 = sphi 0, %s30
      %s24 = sphi 0, %s22
      %s25 = sphi 0, %s23
      %s26 = sphi 0, %s24
      %s27 = sphi 0, %s25
      %s35 = sphi 0, %s35
      %s37 = sphi 0, %s35
      %s38 = sphi 0, %s37
      %s52 = sphi 0, %s38
      %s60 = sphi 0, %s62
      %s63 = sphi 0, %s60
      %s64 = sphi 0, %s63
      %s80 = sphi 0, %s64
      %s88 = sphi 0, %s90
      %s91 = sphi 0, %s88
      %s92 = sphi 0, %s91
      %s108 = sphi 0, %s92
    $region4: #{tpu_custom_call.1} parent=1 // loop_header_branch
      %18 = sbr.rel (%p16) target = $region8
    $region5: #{tpu_custom_call.1} parent=1 // loop_body
      %s20 = ssub.s32 %s15, 1
      %s21 = ssub.s32 %s15, 2
      %s28 = sadd.s32 1, %s23
      %p29 = scmp.ge.s32.totalorder %s28, 2
      %s30 = scalar_select %p29, 0, %s28
      %s31 = sadd.s32 1, %s22
      %s32 = scalar_select %p29, %s31, %s22
      %p33 = scmp.ge.s32.totalorder %s32, 2
      %s34 = scalar_select %p33, 0, %s32
      %s36 = sadd.s32 %s35, 1
      %p39 = scmp.eq.s32.totalorder %s15, 3
      %p40 = scmp.ne.s32.totalorder %s35, %s37
      %p41 = scmp.eq.s32.totalorder %s15, 0
      %p42 = por %p40, %p41
      %p43 = scmp.ne.s32.totalorder %s35, %s37
      %p44 = scmp.eq.s32.totalorder %s20, 3
      %p45 = por %p43, %p44
      %p46 = scmp.ne.s32.totalorder %s37, %s38
      %p47 = scmp.eq.s32.totalorder %s20, 0
      %p48 = por %p46, %p47
      %p49 = scmp.ne.s32.totalorder %s37, %s38
      %p50 = scmp.eq.s32.totalorder %s21, 3
      %p51 = por %p49, %p50
      %p53 = scmp.ne.s32.totalorder %s38, %s52
      %p54 = scmp.eq.s32.totalorder %s21, 0
      %p55 = por %p53, %p54
      %s56 = ssub.s32 %s22, %s34
      %s57 = ssub.s32 %s23, %s30
      %s58 = sor.u32 %s56, %s57
      %p59 = scmp.eq.s32.totalorder %s58, 0
      %s61 = sadd.s32 %s60, 1
      %s62 = scalar_select %p59, %s60, %s61
      %p65 = pneg %p59
      %p66 = scmp.eq.s32.totalorder %s15, 3
      %p67 = por %p65, %p66
      %p68 = scmp.ne.s32.totalorder %s60, %s63
      %p69 = scmp.eq.s32.totalorder %s15, 0
      %p70 = por %p68, %p69
      %p71 = scmp.ne.s32.totalorder %s60, %s63
      %p72 = scmp.eq.s32.totalorder %s20, 3
      %p73 = por %p71, %p72
      %p74 = scmp.ne.s32.totalorder %s63, %s64
      %p75 = scmp.eq.s32.totalorder %s20, 0
      %p76 = por %p74, %p75
      %p77 = scmp.ne.s32.totalorder %s63, %s64
      %p78 = scmp.eq.s32.totalorder %s21, 3
      %p79 = por %p77, %p78
      %p81 = scmp.ne.s32.totalorder %s64, %s80
      %p82 = scmp.eq.s32.totalorder %s21, 0
      %p83 = por %p81, %p82
      %s84 = ssub.s32 %s22, %s34
      %s85 = ssub.s32 %s23, %s30
      %s86 = sor.u32 %s84, %s85
      %p87 = scmp.eq.s32.totalorder %s86, 0
      %s89 = sadd.s32 %s88, 1
      %s90 = scalar_select %p87, %s88, %s89
      %p93 = pneg %p87
      %p94 = scmp.eq.s32.totalorder %s15, 3
      %p95 = por %p93, %p94
      %p96 = scmp.ne.s32.totalorder %s88, %s91
      %p97 = scmp.eq.s32.totalorder %s15, 0
      %p98 = por %p96, %p97
      %p99 = scmp.ne.s32.totalorder %s88, %s91
      %p100 = scmp.eq.s32.totalorder %s20, 3
      %p101 = por %p99, %p100
      %p102 = scmp.ne.s32.totalorder %s91, %s92
      %p103 = scmp.eq.s32.totalorder %s20, 0
      %p104 = por %p102, %p103
      %p105 = scmp.ne.s32.totalorder %s91, %s92
      %p106 = scmp.eq.s32.totalorder %s21, 3
      %p107 = por %p105, %p106
      %p109 = scmp.ne.s32.totalorder %s92, %s108
      %p110 = scmp.eq.s32.totalorder %s21, 0
      %p111 = por %p109, %p110
      %p112 = scmp.le.s32.totalorder 1, %s15
      %p113 = scmp.lt.s32.totalorder %s15, 5
      %p114 = pnand %p112, %p113
      %p115 = pneg %p114
      // Predicated region
      $region9: #{tpu_custom_call.1} parent=5 // pred_check
        _
      $region10: #{tpu_custom_call.1} parent=5 // pred_check_branch
        %117 = sbr.rel (%p114) target = $region12
      $region11: #{tpu_custom_call.1} parent=5 // pred_region
        %s118 = ssub.s32 %s15, 1
        // Predicated region
        $region13: #{tpu_custom_call.1} parent=11 // pred_check
          %p119 = pneg %p48
        $region14: #{tpu_custom_call.1} parent=11 // pred_check_branch
          %121 = sbr.rel (%p119) target = $region16
        $region15: #{tpu_custom_call.1} parent=11 // pred_region
          %s123 = ssub.s32 64, 64
          %124 = vsyncadd [#allocation3], %s123
          %s126 = sshll.u32 [#allocation2], 4
          %s127 = int_to_ptr.vmem [resolvable:$true] %s126
          %129 = dma.hbm_to_vmem [thread:$0]  %s0, 64, %s127, [#allocation3]
        $region16: #{tpu_custom_call.1} parent=11 // pred_fallthru
          _
      $region12: #{tpu_custom_call.1} parent=5 // pred_fallthru
        _
      %p130 = scmp.lt.s32.totalorder %s15, 4
      // Predicated region
      $region17: #{tpu_custom_call.1} parent=5 // pred_check
        %p131 = pneg %p130
      $region18: #{tpu_custom_call.1} parent=5 // pred_check_branch
        %133 = sbr.rel (%p131) target = $region20
      $region19: #{tpu_custom_call.1} parent=5 // pred_region
        // Predicated region
        $region21: #{tpu_custom_call.1} parent=19 // pred_check
          %p134 = pneg %p70
        $region22: #{tpu_custom_call.1} parent=19 // pred_check_branch
          %136 = sbr.rel (%p134) target = $region24
        $region23: #{tpu_custom_call.1} parent=19 // pred_region
          %s137 = sand.u32 %s60, 1
          %s138 = scalar_lea.sflag [#allocation6], %s137
          %s139 = sand.u32 %s60, 1
          %s140 = smul.addr %s139, 4
          %s141 = scalar_lea.vmem [#allocation5], %s140
          %s143 = ssub.s32 64, 64
          %144 = vsyncadd %s138, %s143
          %s145 = smul.addr %s22, 2
          %s146 = sadd.s32 %s23, %s145
          %s147 = smul.addr %s146, 64
          %s148 = scalar_lea.hbm %s1, %s147
          %s150 = sshll.u32 %s141, 4
          %s151 = int_to_ptr.vmem [resolvable:$true] %s150
          %153 = dma.hbm_to_vmem [thread:$0]  %s148, 64, %s151, %s138
        $region24: #{tpu_custom_call.1} parent=19 // pred_fallthru
          _
      $region20: #{tpu_custom_call.1} parent=5 // pred_fallthru
        _
      %p154 = scmp.le.s32.totalorder 1, %s15
      %p155 = scmp.lt.s32.totalorder %s15, 5
      %p156 = pnand %p154, %p155
      %p157 = pneg %p156
      // Predicated region
      $region25: #{tpu_custom_call.1} parent=5 // pred_check
        _
      $region26: #{tpu_custom_call.1} parent=5 // pred_check_branch
        %159 = sbr.rel (%p156) target = $region28
      $region27: #{tpu_custom_call.1} parent=5 // pred_region
        %s160 = ssub.s32 %s15, 1
        // Predicated region
        $region29: #{tpu_custom_call.1} parent=27 // pred_check
          %p161 = pneg %p48
        $region30: #{tpu_custom_call.1} parent=27 // pred_check_branch
          %163 = sbr.rel (%p161) target = $region32
        $region31: #{tpu_custom_call.1} parent=27 // pred_region
          %164 = dma.done [#allocation3], 64
        $region32: #{tpu_custom_call.1} parent=27 // pred_fallthru
          _
        %s165 = sand.u32 %s63, 1
        %s166 = scalar_lea.sflag [#allocation6], %s165
        %s167 = sand.u32 %s63, 1
        %s168 = smul.addr %s167, 4
        %s169 = scalar_lea.vmem [#allocation5], %s168
        // Predicated region
        $region33: #{tpu_custom_call.1} parent=27 // pred_check
          %p170 = pneg %p76
        $region34: #{tpu_custom_call.1} parent=27 // pred_check_branch
          %172 = sbr.rel (%p170) target = $region36
        $region35: #{tpu_custom_call.1} parent=27 // pred_region
          %173 = dma.done %s166, 64
        $region36: #{tpu_custom_call.1} parent=27 // pred_fallthru
          _
        %p174 = pneg %p48
        %p175 = pneg %p45
        %s176 = sand.u32 %s63, 1
        %s177 = scalar_lea.sflag [#allocation6], %s176
        %s178 = sand.u32 %s63, 1
        %s179 = smul.addr %s178, 4
        %s180 = scalar_lea.vmem [#allocation5], %s179
        %p181 = pneg %p76
        %p182 = pneg %p73
        %p183 = pneg %p104
        %p184 = pneg %p101
        %s185 = sand.u32 %s91, 1
        %s186 = scalar_lea.sflag [#allocation4], %s185
        %s187 = sand.u32 %s91, 1
        %s188 = smul.addr %s187, 4
        %s189 = scalar_lea.vmem [#allocation7], %s188
        %v190 = vld [vmem:[#allocation2] sm:$0xf]
        %v191 = vld [vmem:[%s169] sm:$0xf]
        %vm192 = vcmask 31744
        %v194 = vsel %vm192, %v190, 0
        %vm196 = vcmask 1043456
        %v198 = vsel %vm196, %v191, 0
        %200 = vmatprep.subr.mxu0 0.0
        %201 = vmatpush1.msra.mxu0 0.0
        %202 = vmatprep.subr.mxu0 0.0
        %203 = vmatpush1.msra.mxu0 0.0
        %204 = vmatprep.subr.mxu0 0.0
        %205 = vmatpush1.msra.mxu0 0.0
        %206 = vmatprep.subr.mxu0 0.0
        %207 = vmatpush1.msra.mxu0 0.0
        %208 = vmatprep.subr.mxu0 0.0
        %209 = vmatpush1.msra.mxu0 0.0
        %210 = vmatprep.subr.mxu0 0.0
        %211 = vmatpush1.msra.mxu0 0.0
        %212 = vmatprep.subr.mxu0 0.0
        %213 = vmatpush1.msra.mxu0 0.0
        %214 = vmatprep.subr.mxu0 0.0
        %215 = vmatpush1.msra.mxu0 0.0
        %216 = vmatprep.subr.mxu0 0.0
        %217 = vmatpush1.msra.mxu0 0.0
        %218 = vmatprep.subr.mxu0 0.0
        %219 = vmatpush1.msra.mxu0 0.0
        %220 = vmatprep.subr.mxu0 0.0
        %221 = vmatpush1.msra.mxu0 0.0
        %222 = vmatprep.subr.mxu0 0.0
        %223 = vmatpush1.msra.mxu0 0.0
        %224 = vmatprep.subr.mxu0 0.0
        %225 = vmatpush1.msra.mxu0 0.0
        %226 = vmatprep.subr.mxu0 0.0
        %227 = vmatpush1.msra.mxu0 0.0
        %228 = vmatprep.subr.mxu0 0.0
        %229 = vmatpush1.msra.mxu0 0.0
        %230 = vmatprep.subr.mxu0 0.0
        %231 = vmatpush1.msra.mxu0 %v198
        %232 = vmatprep.subr.mxu0 0.0
        %233 = vmatpush2.msra.mxu0 0.0
        %234 = vmatprep.subr.mxu0 0.0
        %235 = vmatpush2.msra.mxu0 0.0
        %236 = vmatprep.subr.mxu0 0.0
        %237 = vmatpush2.msra.mxu0 0.0
        %238 = vmatprep.subr.mxu0 0.0
        %239 = vmatpush2.msra.mxu0 0.0
        %240 = vmatprep.subr.mxu0 0.0
        %241 = vmatpush2.msra.mxu0 0.0
        %242 = vmatprep.subr.mxu0 0.0
        %243 = vmatpush2.msra.mxu0 0.0
        %244 = vmatprep.subr.mxu0 0.0
        %245 = vmatpush2.msra.mxu0 0.0
        %246 = vmatprep.subr.mxu0 0.0
        %247 = vmatpush2.msra.mxu0 0.0
        %248 = vmatprep.subr.mxu0 0.0
        %249 = vmatpush2.msra.mxu0 0.0
        %250 = vmatprep.subr.mxu0 0.0
        %251 = vmatpush2.msra.mxu0 0.0
        %252 = vmatprep.subr.mxu0 0.0
        %253 = vmatpush2.msra.mxu0 0.0
        %254 = vmatprep.subr.mxu0 0.0
        %255 = vmatpush2.msra.mxu0 0.0
        %256 = vmatprep.subr.mxu0 0.0
        %257 = vmatpush2.msra.mxu0 0.0
        %258 = vmatprep.subr.mxu0 0.0
        %259 = vmatpush2.msra.mxu0 0.0
        %260 = vmatprep.subr.mxu0 0.0
        %261 = vmatpush2.msra.mxu0 0.0
        %262 = vmatprep.subr.mxu0 0.0
        %263 = vmatpush2.msra.mxu0 0.0
        %264 = vmatprep.mubr.f32.mxu0 0.0
        %265 = vmatmul.mubr.f32.gmra.mxu0 %v194
        %v266 = vpop.f32.mrf.mxu0
        %v267 = vadd.f32 0.0, %v266
        %v268 = vpop.f32.mrf.mxu0
        %269 = vdwg.mxu0
        %270 = vst [vmem:[%s189] sm:$0xf] %v267
        %s271 = sand.u32 %s91, 1
        %s272 = scalar_lea.sflag [#allocation4], %s271
        %s273 = sand.u32 %s91, 1
        %s274 = smul.addr %s273, 4
        %s275 = scalar_lea.vmem [#allocation7], %s274
        // Predicated region
        $region37: #{tpu_custom_call.1} parent=27 // pred_check
          %p276 = pneg %p101
        $region38: #{tpu_custom_call.1} parent=27 // pred_check_branch
          %278 = sbr.rel (%p276) target = $region40
        $region39: #{tpu_custom_call.1} parent=27 // pred_region
          %s280 = ssub.s32 64, 64
          %281 = vsyncadd %s272, %s280
          %s282 = smul.addr %s24, 2
          %s283 = sadd.s32 %s25, %s282
          %s284 = smul.addr %s283, 64
          %s285 = scalar_lea.hbm %s2, %s284
          %s287 = sshll.u32 %s275, 4
          %s288 = int_to_ptr.vmem [resolvable:$true] %s287
          %290 = dma.vmem_to_hbm [thread:$0]  %s288, 64, %s285, %s272
        $region40: #{tpu_custom_call.1} parent=27 // pred_fallthru
          _
      $region28: #{tpu_custom_call.1} parent=5 // pred_fallthru
        _
      %p291 = scmp.le.s32.totalorder 2, %s15
      // Predicated region
      $region41: #{tpu_custom_call.1} parent=5 // pred_check
        %p292 = pneg %p291
      $region42: #{tpu_custom_call.1} parent=5 // pred_check_branch
        %294 = sbr.rel (%p292) target = $region44
      $region43: #{tpu_custom_call.1} parent=5 // pred_region
        %s295 = ssub.s32 %s15, 2
        // Predicated region
        $region45: #{tpu_custom_call.1} parent=43 // pred_check
          %p296 = pneg %p107
        $region46: #{tpu_custom_call.1} parent=43 // pred_check_branch
          %298 = sbr.rel (%p296) target = $region48
        $region47: #{tpu_custom_call.1} parent=43 // pred_region
          %s299 = sand.u32 %s92, 1
          %s300 = scalar_lea.sflag [#allocation4], %s299
          %s301 = sand.u32 %s92, 1
          %s302 = smul.addr %s301, 4
          %s303 = scalar_lea.vmem [#allocation7], %s302
          %304 = dma.done %s300, 64
        $region48: #{tpu_custom_call.1} parent=43 // pred_fallthru
          _
      $region44: #{tpu_custom_call.1} parent=5 // pred_fallthru
        _
    $region6: #{tpu_custom_call.1} parent=1 // loop_footer
      %s19 = sadd.s32 1, %s15
    $region7: #{tpu_custom_call.1} parent=1 // loop_footer_branch
      %14 = sbr.rel target = $region3
    $region8: #{tpu_custom_call.1} parent=1 // loop_exit
      _
    %305 = vsyncpa [#allocation3], 1
    %s306 = scalar_lea.sflag [#allocation3], 1
    %307 = vsyncpa %s306, 1
    %308 = vsyncpa [#allocation6], 1
    %s309 = scalar_lea.sflag [#allocation6], 1
    %310 = vsyncpa %s309, 1
    %311 = vsyncpa [#allocation4], 1
    %s312 = scalar_lea.sflag [#allocation4], 1
    %313 = vsyncpa %s312, 1

</llo_original>
